<compile_context>
chip_gen: v5e
topology: v5e:2x2
jax: 0.10.0
libtpu: 0.0.40
codegen_flags: <defaults>
</compile_context>

<pallas_src>
import jax
import jax.numpy as jnp
from jax.experimental import pallas as pl
from jax.experimental.pallas import tpu as pltpu

_LANE = 128
_SUBLANE = 8


def _round_up(x: int, m: int) -> int:
    return ((x + m - 1) // m) * m


def _make_mlp_kernel(num_layers: int, apply_relu: bool, add_bias: bool,
                     compute_dtype):
    """Fused kernel; refs = (x_tile, [w (+ b)] * num_layers, out_tile)."""

    def kernel(*refs):
        x_ref = refs[0]
        o_ref = refs[-1]
        params = refs[1:-1]

        # Feed the MXU low-precision inputs; accumulate in f32.
        h = x_ref[...].astype(compute_dtype)
        idx = 0
        for layer in range(num_layers):
            w = params[idx][...]          # (in_pad, out_pad), compute_dtype
            idx += 1
            acc = jnp.dot(h, w, preferred_element_type=jnp.float32)
            if add_bias:
                acc = acc + params[idx][...].astype(jnp.float32)  # (1, out_pad)
                idx += 1
            if apply_relu and layer < num_layers - 1:
                acc = jnp.maximum(acc, 0.0)           # VPU elementwise ReLU
            if layer < num_layers - 1:
                h = acc.astype(compute_dtype)          # bf16 between layers
            else:
                o_ref[...] = acc.astype(o_ref.dtype)   # lane-dense store

    return kernel


def mlp_forward(x, weights_t, biases=None, *, make_linear=False,
                block_rows=256, compute_dtype=jnp.bfloat16):
    """Run the fused Pallas MLP.

    x:          (batch, num_in) f32
    weights_t:  list of (in_features, out_features) f32 (already transposed)
    biases:     optional list of (1, out_features) f32
    """
    num_layers = len(weights_t)
    add_bias = biases is not None
    apply_relu = not make_linear

    batch, num_in = x.shape
    num_out = weights_t[-1].shape[1]

    # --- lane-pad every feature dim to a multiple of 128 (exact: zero pads) ---
    dims = [num_in] + [w.shape[1] for w in weights_t]
    pdims = [_round_up(d, _LANE) for d in dims]
    in_pad, out_pad = pdims[0], pdims[-1]

    # --- batch tiling: multiple-of-8 sublane tiles, default 256 rows ---------
    bt = min(block_rows, _round_up(batch, _SUBLANE))
    bt = _round_up(bt, _SUBLANE)
    batch_p = _round_up(batch, bt)
    n_tiles = batch_p // bt

    # --- pad inputs / weights once in the wrapper ----------------------------
    xp = jnp.zeros((batch_p, in_pad), jnp.float32).at[:batch, :num_in].set(x)

    args = [xp]
    in_specs = [pl.BlockSpec((bt, in_pad), lambda i: (i, 0))]
    flops = 0
    bytes_accessed = xp.size * 4
    for li, w in enumerate(weights_t):
        din, dout = w.shape
        wp = jnp.zeros((pdims[li], pdims[li + 1]), compute_dtype)
        wp = wp.at[:din, :dout].set(w.astype(compute_dtype))
        args.append(wp)
        # Weights resident in VMEM across all batch tiles.
        in_specs.append(pl.BlockSpec(wp.shape, lambda i: (0, 0)))
        flops += 2 * batch_p * pdims[li] * pdims[li + 1]
        bytes_accessed += int(wp.size) * wp.dtype.itemsize
        if add_bias:
            bp = jnp.zeros((1, pdims[li + 1]), jnp.float32)
            bp = bp.at[:, :dout].set(biases[li])
            args.append(bp)
            in_specs.append(pl.BlockSpec(bp.shape, lambda i: (0, 0)))
            bytes_accessed += int(bp.size) * 4
    bytes_accessed += batch_p * out_pad * 4

    kernel = _make_mlp_kernel(num_layers, apply_relu, add_bias, compute_dtype)

    # --- VMEM budget: resident params + double-buffered I/O tiles + acts -----
    # TODO(synk): if this MLP is scaled up (num_mid in the thousands), add a
    # K-tiling grid axis with a pl.when-guarded f32 accumulator instead of
    # keeping all weights resident (v7x has only 64 MiB physical VMEM).
    param_bytes = sum(int(a.size) * a.dtype.itemsize for a in args[1:])
    tile_io_bytes = 2 * (bt * in_pad * 4 + bt * out_pad * 4)      # double-buffered
    act_bytes = 2 * bt * max(pdims) * 4                           # chained activations
    vmem_limit = int(min(param_bytes + tile_io_bytes + act_bytes + (8 << 20),
                         64 << 20))

    out_p = pl.pallas_call(
        kernel,
        out_shape=jax.ShapeDtypeStruct((batch_p, out_pad), jnp.float32),
        grid_spec=pl.GridSpec(
            grid=(n_tiles,),
            in_specs=in_specs,
            out_specs=pl.BlockSpec((bt, out_pad), lambda i: (i, 0)),
        ),
        compiler_params=pltpu.CompilerParams(
            dimension_semantics=("parallel",),   # megacore-shard batch on v7x
            vmem_limit_bytes=vmem_limit,
        ),
        cost_estimate=pl.CostEstimate(
            flops=int(flops),
            transcendentals=0,
            bytes_accessed=int(bytes_accessed),
        ),
    )(*args)

    return out_p[:batch, :num_out]


def init_params(key, num_layers, num_in, num_out, num_mid, add_bias=False):
    """Deterministic re-implementation of Net.__init__ parameter init:
    each Linear weight ~ Normal(0, 1/sqrt(fan_in)); weights returned transposed
    to (in_features, out_features)."""
    dims = [num_in] + [num_mid] * (num_layers - 1) + [num_out]
    weights_t, biases = [], []
    for i in range(num_layers):
        fan_in, fan_out = dims[i], dims[i + 1]
        stddev = 1.0 / jnp.sqrt(jnp.float32(fan_in))
        key, wk, bk = jax.random.split(key, 3)
        # PyTorch stores (out, in); sample that shape then transpose.
        w = jax.random.normal(wk, (fan_out, fan_in), jnp.float32) * stddev
        weights_t.append(w.T)
        if add_bias:
            b = jax.random.normal(bk, (1, fan_out), jnp.float32) * stddev
            biases.append(b)
    return weights_t, (biases if add_bias else None)


def reference_forward(x, weights_t, biases=None, *, make_linear=False):
    """Pure-JAX f32 reference mirroring Net.forward."""
    h = x
    n = len(weights_t)
    for i, w in enumerate(weights_t):
        h = h @ w
        if biases is not None:
            h = h + biases[i]
        if (not make_linear) and i < n - 1:
            h = jnp.maximum(h, 0.0)
    return h


if __name__ == "__main__":
    # Net(num_layers=4, num_in=32, num_out=16, num_mid=128) with defaults
    # (make_linear=False, add_bias=False) -> inLayer, 2 mid layers, outLayer.
    # batch=512 with 256-row tiles -> grid=(2,), exercising pipelining and the
    # "parallel" batch axis.
    num_layers, num_in, num_out, num_mid = 4, 32, 16, 128
    batch = 512

    key = jax.random.PRNGKey(0)
    key, xk = jax.random.split(key)
    x = jax.random.normal(xk, (batch, num_in), jnp.float32)

    weights_t, biases = init_params(key, num_layers, num_in, num_out, num_mid,
                                    add_bias=False)

    out = mlp_forward(x, weights_t, biases, make_linear=False, block_rows=256)
    out = jax.block_until_ready(out)

    ref = reference_forward(x, weights_t, biases, make_linear=False)
    assert out.shape == (batch, num_out)
    # Tolerance relaxed vs the f32 reference because activations/weights are
    # carried in bf16 between layers (f32 accumulation inside each matmul).
    assert jnp.allclose(out, ref, atol=5e-2, rtol=5e-2), (
        float(jnp.max(jnp.abs(out - ref))))

    print("KERNEL_OK")
</pallas_src>

<mosaic_0001>
module attributes {stable_mosaic.version = 11 : i64} {
  func.func @kernel(%arg0: i32, %arg1: memref<256x128xf32, #tpu.memory_space<vmem>>, %arg2: memref<128x128xbf16, #tpu.memory_space<vmem>>, %arg3: memref<128x128xbf16, #tpu.memory_space<vmem>>, %arg4: memref<128x128xbf16, #tpu.memory_space<vmem>>, %arg5: memref<128x128xbf16, #tpu.memory_space<vmem>>, %arg6: memref<256x128xf32, #tpu.memory_space<vmem>>) attributes {dimension_semantics = [#tpu.dimension_semantics<parallel>], iteration_bounds = array<i64: 2>, scalar_prefetch = 0 : i64, scratch_operands = 0 : i64, tpu.core_type = #tpu.core_type<tc>, window_params = [{transform_indices = @transform_0, window_bounds = array<i64: 256, 128>}, {pipeline_mode = #tpu.pipeline_mode<synchronous>, transform_indices = @transform_1, window_bounds = array<i64: 128, 128>}, {pipeline_mode = #tpu.pipeline_mode<synchronous>, transform_indices = @transform_2, window_bounds = array<i64: 128, 128>}, {pipeline_mode = #tpu.pipeline_mode<synchronous>, transform_indices = @transform_3, window_bounds = array<i64: 128, 128>}, {pipeline_mode = #tpu.pipeline_mode<synchronous>, transform_indices = @transform_4, window_bounds = array<i64: 128, 128>}, {transform_indices = @transform_5, window_bounds = array<i64: 256, 128>}]} {
    %c0 = arith.constant 0 : index
    %c0_0 = arith.constant 0 : index
    %0 = vector.load %arg1[%c0, %c0_0] : memref<256x128xf32, #tpu.memory_space<vmem>>, vector<256x128xf32>
    %1 = arith.truncf %0 : vector<256x128xf32> to vector<256x128xbf16>
    %c0_1 = arith.constant 0 : index
    %c0_2 = arith.constant 0 : index
    %2 = vector.load %arg2[%c0_1, %c0_2] : memref<128x128xbf16, #tpu.memory_space<vmem>>, vector<128x128xbf16>
    %cst = arith.constant dense<0.000000e+00> : vector<256x128xf32>
    %3 = tpu.matmul %1, %2, %cst {dimension_numbers = #tpu.dot_dimension_numbers<[1], [0], [0], [1], [0, 0, 1, 1], [], []>} : vector<256x128xbf16>, vector<128x128xbf16>, vector<256x128xf32> -> vector<256x128xf32>
    %cst_3 = arith.constant 0.000000e+00 : f32
    %4 = vector.broadcast %cst_3 : f32 to vector<256x128xf32>
    %5 = arith.maximumf %3, %4 : vector<256x128xf32>
    %6 = arith.truncf %5 : vector<256x128xf32> to vector<256x128xbf16>
    %c0_4 = arith.constant 0 : index
    %c0_5 = arith.constant 0 : index
    %7 = vector.load %arg3[%c0_4, %c0_5] : memref<128x128xbf16, #tpu.memory_space<vmem>>, vector<128x128xbf16>
    %cst_6 = arith.constant dense<0.000000e+00> : vector<256x128xf32>
    %8 = tpu.matmul %6, %7, %cst_6 {dimension_numbers = #tpu.dot_dimension_numbers<[1], [0], [0], [1], [0, 0, 1, 1], [], []>} : vector<256x128xbf16>, vector<128x128xbf16>, vector<256x128xf32> -> vector<256x128xf32>
    %cst_7 = arith.constant 0.000000e+00 : f32
    %9 = vector.broadcast %cst_7 : f32 to vector<256x128xf32>
    %10 = arith.maximumf %8, %9 : vector<256x128xf32>
    %11 = arith.truncf %10 : vector<256x128xf32> to vector<256x128xbf16>
    %c0_8 = arith.constant 0 : index
    %c0_9 = arith.constant 0 : index
    %12 = vector.load %arg4[%c0_8, %c0_9] : memref<128x128xbf16, #tpu.memory_space<vmem>>, vector<128x128xbf16>
    %cst_10 = arith.constant dense<0.000000e+00> : vector<256x128xf32>
    %13 = tpu.matmul %11, %12, %cst_10 {dimension_numbers = #tpu.dot_dimension_numbers<[1], [0], [0], [1], [0, 0, 1, 1], [], []>} : vector<256x128xbf16>, vector<128x128xbf16>, vector<256x128xf32> -> vector<256x128xf32>
    %cst_11 = arith.constant 0.000000e+00 : f32
    %14 = vector.broadcast %cst_11 : f32 to vector<256x128xf32>
    %15 = arith.maximumf %13, %14 : vector<256x128xf32>
    %16 = arith.truncf %15 : vector<256x128xf32> to vector<256x128xbf16>
    %c0_12 = arith.constant 0 : index
    %c0_13 = arith.constant 0 : index
    %17 = vector.load %arg5[%c0_12, %c0_13] : memref<128x128xbf16, #tpu.memory_space<vmem>>, vector<128x128xbf16>
    %cst_14 = arith.constant dense<0.000000e+00> : vector<256x128xf32>
    %18 = tpu.matmul %16, %17, %cst_14 {dimension_numbers = #tpu.dot_dimension_numbers<[1], [0], [0], [1], [0, 0, 1, 1], [], []>} : vector<256x128xbf16>, vector<128x128xbf16>, vector<256x128xf32> -> vector<256x128xf32>
    %c0_15 = arith.constant 0 : index
    %c0_16 = arith.constant 0 : index
    %19 = vector.load %arg6[%c0_15, %c0_16] : memref<256x128xf32, #tpu.memory_space<vmem>>, vector<256x128xf32>
    tpu.vector_store %arg6[%c0_15, %c0_16], %18 {strides = array<i32>} : memref<256x128xf32, #tpu.memory_space<vmem>>, vector<256x128xf32>,
    return
  }
  func.func @transform_0(%arg0: i32) -> (i32, i32) {
    %c0_i32 = arith.constant 0 : i32
    %c0_i32_0 = arith.constant 0 : i32
    return %arg0, %c0_i32 : i32, i32
  }
  func.func @transform_1(%arg0: i32) -> (i32, i32) {
    %c0_i32 = arith.constant 0 : i32
    %c0_i32_0 = arith.constant 0 : i32
    %c0_i32_1 = arith.constant 0 : i32
    return %c0_i32, %c0_i32_0 : i32, i32
  }
  func.func @transform_2(%arg0: i32) -> (i32, i32) {
    %c0_i32 = arith.constant 0 : i32
    %c0_i32_0 = arith.constant 0 : i32
    %c0_i32_1 = arith.constant 0 : i32
    return %c0_i32, %c0_i32_0 : i32, i32
  }
  func.func @transform_3(%arg0: i32) -> (i32, i32) {
    %c0_i32 = arith.constant 0 : i32
    %c0_i32_0 = arith.constant 0 : i32
    %c0_i32_1 = arith.constant 0 : i32
    return %c0_i32, %c0_i32_0 : i32, i32
  }
  func.func @transform_4(%arg0: i32) -> (i32, i32) {
    %c0_i32 = arith.constant 0 : i32
    %c0_i32_0 = arith.constant 0 : i32
    %c0_i32_1 = arith.constant 0 : i32
    return %c0_i32, %c0_i32_0 : i32, i32
  }
  func.func @transform_5(%arg0: i32) -> (i32, i32) {
    %c0_i32 = arith.constant 0 : i32
    %c0_i32_0 = arith.constant 0 : i32
    return %arg0, %c0_i32 : i32, i32
  }
}

</mosaic_0001>

<llo_original>
// kernel: tpu_custom_call.1
$region0: #{tpu_custom_call.1}
  #allocation0 [shape = 'u32[]', space=smem, size = 0x4, offset = 0x4, fixed_abs, tag = 'smem constant byte address 0x4 - core index']
  #allocation1 [shape = 'u32[72,128]{1,0:T(1,128)}', space=vmem, size = 0x9000, scoped, tag = 'internal scratch']
  %s0 = inlined_call_operand.hbm [shape: f32[512,128], index: 0, kind: input, shape index: {}]
  %s1 = inlined_call_operand.hbm [shape: bf16[128,128], index: 1, kind: input, shape index: {}]
  %s2 = inlined_call_operand.hbm [shape: bf16[128,128], index: 2, kind: input, shape index: {}]
  %s3 = inlined_call_operand.hbm [shape: bf16[128,128], index: 3, kind: input, shape index: {}]
  %s4 = inlined_call_operand.hbm [shape: bf16[128,128], index: 4, kind: input, shape index: {}]
  %s5 = inlined_call_operand.hbm [shape: f32[512,128], index: 5, kind: output, shape index: {}]
  %s6 = sld [smem:[#allocation0]]
  $region73: #{tpu_custom_call.1} parent=0
    _
  %s8 = ssub.s32 1, %s6
  %s9 = scalar_select 0, %s8, %s6
  $region1: #{tpu_custom_call.1} parent=0
    #allocation2 [shape = 'u8[262144]{0}', space=vmem, size = 0x40000, scoped, tag = 'input window, operand 0']
    #allocation3 [shape = 's32[2]{0}', space=sflag, size = 0x8, scoped, tag = 'scoped memory for tpu_custom_call.1']
    #allocation4 [shape = 's32[2]{0}', space=sflag, size = 0x8, scoped, tag = 'scoped memory for tpu_custom_call.1']
    #allocation5 [shape = 'u8[32768]{0}', space=vmem, size = 0x8000, scoped, tag = 'input window, operand 1, single buffered']
    #allocation6 [shape = 's32[1]{0}', space=sflag, size = 0x4, scoped, tag = 'scoped memory for tpu_custom_call.1']
    #allocation7 [shape = 'u8[32768]{0}', space=vmem, size = 0x8000, scoped, tag = 'input window, operand 2, single buffered']
    #allocation8 [shape = 'u8[32768]{0}', space=vmem, size = 0x8000, scoped, tag = 'input window, operand 3, single buffered']
    #allocation9 [shape = 's32[1]{0}', space=sflag, size = 0x4, scoped, tag = 'scoped memory for tpu_custom_call.1']
    #allocation10 [shape = 'u8[32768]{0}', space=vmem, size = 0x8000, scoped, tag = 'input window, operand 4, single buffered']
    #allocation11 [shape = 'u8[262144]{0}', space=vmem, size = 0x40000, scoped, tag = 'output window, operand 0']
    %10 = vsyncpa [#allocation3], 0
    %s11 = scalar_lea.sflag [#allocation3], 1
    %12 = vsyncpa %s11, 0
    %13 = vsyncpa [#allocation6], 0
    %14 = vsyncpa [#allocation9], 0
    %15 = vsyncpa [#allocation4], 0
    %s16 = scalar_lea.sflag [#allocation4], 1
    %17 = vsyncpa %s16, 0
    loop: start=0, step=1, limit=4
    $region2: #{tpu_custom_call.1} parent=1 // loop_pre_header
      _
    $region3: #{tpu_custom_call.1} parent=1 // loop_header
      %s19 = sphi 0, %s23
      %p20 = scmp.ge.s32.totalorder %s19, 4
      %s29 = sphi 0, %s31
      %s32 = sphi 0, %s29
      %s33 = sphi 0, %s32
      %s49 = sphi 0, %s33
      %s53 = sphi 0, %s53
      %s55 = sphi 0, %s53
      %s56 = sphi 0, %s55
      %s70 = sphi 0, %s56
      %s74 = sphi 0, %s74
      %s76 = sphi 0, %s74
      %s77 = sphi 0, %s76
      %s91 = sphi 0, %s77
      %s95 = sphi 0, %s95
      %s97 = sphi 0, %s95
      %s98 = sphi 0, %s97
      %s112 = sphi 0, %s98
      %s116 = sphi 0, %s116
      %s118 = sphi 0, %s116
      %s119 = sphi 0, %s118
      %s133 = sphi 0, %s119
      %s139 = sphi 0, %s141
      %s142 = sphi 0, %s139
      %s143 = sphi 0, %s142
      %s159 = sphi 0, %s143
    $region4: #{tpu_custom_call.1} parent=1 // loop_header_branch
      %22 = sbr.rel (%p20) target = $region8
    $region5: #{tpu_custom_call.1} parent=1 // loop_body
      %s24 = ssub.s32 %s19, 1
      %s25 = ssub.s32 %s19, 2
      %s26 = sadd.s32 %s19, 1
      %s27 = ssub.s32 %s19, %s26
      %p28 = scmp.eq.s32.totalorder %s27, 0
      %s30 = sadd.s32 %s29, 1
      %s31 = scalar_select %p28, %s29, %s30
      %p34 = pneg %p28
      %p35 = scmp.eq.s32.totalorder %s19, 1
      %p36 = por %p34, %p35
      %p37 = scmp.ne.s32.totalorder %s29, %s32
      %p38 = scmp.eq.s32.totalorder %s19, 0
      %p39 = por %p37, %p38
      %p40 = scmp.ne.s32.totalorder %s29, %s32
      %p41 = scmp.eq.s32.totalorder %s24, 1
      %p42 = por %p40, %p41
      %p43 = scmp.ne.s32.totalorder %s32, %s33
      %p44 = scmp.eq.s32.totalorder %s24, 0
      %p45 = por %p43, %p44
      %p46 = scmp.ne.s32.totalorder %s32, %s33
      %p47 = scmp.eq.s32.totalorder %s25, 1
      %p48 = por %p46, %p47
      %p50 = scmp.ne.s32.totalorder %s33, %s49
      %p51 = scmp.eq.s32.totalorder %s25, 0
      %p52 = por %p50, %p51
      %s54 = sadd.s32 %s53, 1
      %p57 = scmp.eq.s32.totalorder %s19, 1
      %p58 = scmp.ne.s32.totalorder %s53, %s55
      %p59 = scmp.eq.s32.totalorder %s19, 0
      %p60 = por %p58, %p59
      %p61 = scmp.ne.s32.totalorder %s53, %s55
      %p62 = scmp.eq.s32.totalorder %s24, 1
      %p63 = por %p61, %p62
      %p64 = scmp.ne.s32.totalorder %s55, %s56
      %p65 = scmp.eq.s32.totalorder %s24, 0
      %p66 = por %p64, %p65
      %p67 = scmp.ne.s32.totalorder %s55, %s56
      %p68 = scmp.eq.s32.totalorder %s25, 1
      %p69 = por %p67, %p68
      %p71 = scmp.ne.s32.totalorder %s56, %s70
      %p72 = scmp.eq.s32.totalorder %s25, 0
      %p73 = por %p71, %p72
      %s75 = sadd.s32 %s74, 1
      %p78 = scmp.eq.s32.totalorder %s19, 1
      %p79 = scmp.ne.s32.totalorder %s74, %s76
      %p80 = scmp.eq.s32.totalorder %s19, 0
      %p81 = por %p79, %p80
      %p82 = scmp.ne.s32.totalorder %s74, %s76
      %p83 = scmp.eq.s32.totalorder %s24, 1
      %p84 = por %p82, %p83
      %p85 = scmp.ne.s32.totalorder %s76, %s77
      %p86 = scmp.eq.s32.totalorder %s24, 0
      %p87 = por %p85, %p86
      %p88 = scmp.ne.s32.totalorder %s76, %s77
      %p89 = scmp.eq.s32.totalorder %s25, 1
      %p90 = por %p88, %p89
      %p92 = scmp.ne.s32.totalorder %s77, %s91
      %p93 = scmp.eq.s32.totalorder %s25, 0
      %p94 = por %p92, %p93
      %s96 = sadd.s32 %s95, 1
      %p99 = scmp.eq.s32.totalorder %s19, 1
      %p100 = scmp.ne.s32.totalorder %s95, %s97
      %p101 = scmp.eq.s32.totalorder %s19, 0
      %p102 = por %p100, %p101
      %p103 = scmp.ne.s32.totalorder %s95, %s97
      %p104 = scmp.eq.s32.totalorder %s24, 1
      %p105 = por %p103, %p104
      %p106 = scmp.ne.s32.totalorder %s97, %s98
      %p107 = scmp.eq.s32.totalorder %s24, 0
      %p108 = por %p106, %p107
      %p109 = scmp.ne.s32.totalorder %s97, %s98
      %p110 = scmp.eq.s32.totalorder %s25, 1
      %p111 = por %p109, %p110
      %p113 = scmp.ne.s32.totalorder %s98, %s112
      %p114 = scmp.eq.s32.totalorder %s25, 0
      %p115 = por %p113, %p114
      %s117 = sadd.s32 %s116, 1
      %p120 = scmp.eq.s32.totalorder %s19, 1
      %p121 = scmp.ne.s32.totalorder %s116, %s118
      %p122 = scmp.eq.s32.totalorder %s19, 0
      %p123 = por %p121, %p122
      %p124 = scmp.ne.s32.totalorder %s116, %s118
      %p125 = scmp.eq.s32.totalorder %s24, 1
      %p126 = por %p124, %p125
      %p127 = scmp.ne.s32.totalorder %s118, %s119
      %p128 = scmp.eq.s32.totalorder %s24, 0
      %p129 = por %p127, %p128
      %p130 = scmp.ne.s32.totalorder %s118, %s119
      %p131 = scmp.eq.s32.totalorder %s25, 1
      %p132 = por %p130, %p131
      %p134 = scmp.ne.s32.totalorder %s119, %s133
      %p135 = scmp.eq.s32.totalorder %s25, 0
      %p136 = por %p134, %p135
      %s137 = ssub.s32 %s19, %s26
      %p138 = scmp.eq.s32.totalorder %s137, 0
      %s140 = sadd.s32 %s139, 1
      %s141 = scalar_select %p138, %s139, %s140
      %p144 = pneg %p138
      %p145 = scmp.eq.s32.totalorder %s19, 1
      %p146 = por %p144, %p145
      %p147 = scmp.ne.s32.totalorder %s139, %s142
      %p148 = scmp.eq.s32.totalorder %s19, 0
      %p149 = por %p147, %p148
      %p150 = scmp.ne.s32.totalorder %s139, %s142
      %p151 = scmp.eq.s32.totalorder %s24, 1
      %p152 = por %p150, %p151
      %p153 = scmp.ne.s32.totalorder %s142, %s143
      %p154 = scmp.eq.s32.totalorder %s24, 0
      %p155 = por %p153, %p154
      %p156 = scmp.ne.s32.totalorder %s142, %s143
      %p157 = scmp.eq.s32.totalorder %s25, 1
      %p158 = por %p156, %p157
      %p160 = scmp.ne.s32.totalorder %s143, %s159
      %p161 = scmp.eq.s32.totalorder %s25, 0
      %p162 = por %p160, %p161
      %p163 = scmp.le.s32.totalorder 1, %s19
      %p164 = scmp.lt.s32.totalorder %s19, 3
      %p165 = pnand %p163, %p164
      %p166 = pneg %p165
      // Predicated region
      $region9: #{tpu_custom_call.1} parent=5 // pred_check
        _
      $region10: #{tpu_custom_call.1} parent=5 // pred_check_branch
        %168 = sbr.rel (%p165) target = $region12
      $region11: #{tpu_custom_call.1} parent=5 // pred_region
        %s169 = ssub.s32 %s19, 1
        // Predicated region
        $region13: #{tpu_custom_call.1} parent=11 // pred_check
          %p170 = pneg %p66
        $region14: #{tpu_custom_call.1} parent=11 // pred_check_branch
          %172 = sbr.rel (%p170) target = $region16
        $region15: #{tpu_custom_call.1} parent=11 // pred_region
          %174 = vsyncadd [#allocation6], 0
          %s175 = sshll.u32 %s1, 4
          %s176 = int_to_ptr.hbm [resolvable:$true] %s175
          %s177 = sshll.u32 [#allocation5], 4
          %s178 = int_to_ptr.vmem [resolvable:$true] %s177
          %183 = dma.hbm_to_vmem [thread:$0]  %s176, 1024, %s178, [#allocation6], 64, 64, 4
        $region16: #{tpu_custom_call.1} parent=11 // pred_fallthru
          _
        // Predicated region
        $region17: #{tpu_custom_call.1} parent=11 // pred_check
          %p184 = pneg %p87
        $region18: #{tpu_custom_call.1} parent=11 // pred_check_branch
          %186 = sbr.rel (%p184) target = $region20
        $region19: #{tpu_custom_call.1} parent=11 // pred_region
          %188 = vsyncadd [#allocation6], 0
          %s189 = sshll.u32 %s2, 4
          %s190 = int_to_ptr.hbm [resolvable:$true] %s189
          %s191 = sshll.u32 [#allocation7], 4
          %s192 = int_to_ptr.vmem [resolvable:$true] %s191
          %197 = dma.hbm_to_vmem [thread:$0]  %s190, 1024, %s192, [#allocation6], 64, 64, 4
        $region20: #{tpu_custom_call.1} parent=11 // pred_fallthru
          _
        // Predicated region
        $region21: #{tpu_custom_call.1} parent=11 // pred_check
          %p198 = pneg %p108
        $region22: #{tpu_custom_call.1} parent=11 // pred_check_branch
          %200 = sbr.rel (%p198) target = $region24
        $region23: #{tpu_custom_call.1} parent=11 // pred_region
          %202 = vsyncadd [#allocation9], 0
          %s203 = sshll.u32 %s3, 4
          %s204 = int_to_ptr.hbm [resolvable:$true] %s203
          %s205 = sshll.u32 [#allocation8], 4
          %s206 = int_to_ptr.vmem [resolvable:$true] %s205
          %211 = dma.hbm_to_vmem [thread:$0]  %s204, 1024, %s206, [#allocation9], 64, 64, 4
        $region24: #{tpu_custom_call.1} parent=11 // pred_fallthru
          _
        // Predicated region
        $region25: #{tpu_custom_call.1} parent=11 // pred_check
          %p212 = pneg %p129
        $region26: #{tpu_custom_call.1} parent=11 // pred_check_branch
          %214 = sbr.rel (%p212) target = $region28
        $region27: #{tpu_custom_call.1} parent=11 // pred_region
          %216 = vsyncadd [#allocation9], 0
          %s217 = sshll.u32 %s4, 4
          %s218 = int_to_ptr.hbm [resolvable:$true] %s217
          %s219 = sshll.u32 [#allocation10], 4
          %s220 = int_to_ptr.vmem [resolvable:$true] %s219
          %225 = dma.hbm_to_vmem [thread:$0]  %s218, 1024, %s220, [#allocation9], 64, 64, 4
        $region28: #{tpu_custom_call.1} parent=11 // pred_fallthru
          _
      $region12: #{tpu_custom_call.1} parent=5 // pred_fallthru
        _
      %p226 = scmp.lt.s32.totalorder %s19, 2
      // Predicated region
      $region29: #{tpu_custom_call.1} parent=5 // pred_check
        %p227 = pneg %p226
      $region30: #{tpu_custom_call.1} parent=5 // pred_check_branch
        %229 = sbr.rel (%p227) target = $region32
      $region31: #{tpu_custom_call.1} parent=5 // pred_region
        // Predicated region
        $region33: #{tpu_custom_call.1} parent=31 // pred_check
          %p230 = pneg %p39
        $region34: #{tpu_custom_call.1} parent=31 // pred_check_branch
          %232 = sbr.rel (%p230) target = $region36
        $region35: #{tpu_custom_call.1} parent=31 // pred_region
          %s233 = sand.u32 %s29, 1
          %s234 = scalar_lea.sflag [#allocation3], %s233
          %s235 = sand.u32 %s29, 1
          %s236 = smul.addr %s235, 256
          %s237 = scalar_lea.vmem [#allocation2], %s236
          %s238 = smul.u32 32, %s19
          %240 = vsyncadd %s234, 0
          %s241 = smul.addr %s238, 8
          %s242 = scalar_lea.hbm %s0, %s241
          %s243 = sshll.u32 %s242, 4
          %s244 = int_to_ptr.hbm [resolvable:$true] %s243
          %s245 = sshll.u32 %s237, 4
          %s246 = int_to_ptr.vmem [resolvable:$true] %s245
          %251 = dma.hbm_to_vmem [thread:$0]  %s244, 4096, %s246, %s234, 128, 128, 8
        $region36: #{tpu_custom_call.1} parent=31 // pred_fallthru
          _
      $region32: #{tpu_custom_call.1} parent=5 // pred_fallthru
        _
      %p252 = scmp.le.s32.totalorder 1, %s19
      %p253 = scmp.lt.s32.totalorder %s19, 3
      %p254 = pnand %p252, %p253
      %p255 = pneg %p254
      // Predicated region
      $region37: #{tpu_custom_call.1} parent=5 // pred_check
        _
      $region38: #{tpu_custom_call.1} parent=5 // pred_check_branch
        %257 = sbr.rel (%p254) target = $region40
      $region39: #{tpu_custom_call.1} parent=5 // pred_region
        %s258 = ssub.s32 %s19, 1
        %s259 = sand.u32 %s32, 1
        %s260 = scalar_lea.sflag [#allocation3], %s259
        %s261 = sand.u32 %s32, 1
        %s262 = smul.addr %s261, 256
        %s263 = scalar_lea.vmem [#allocation2], %s262
        // Predicated region
        $region41: #{tpu_custom_call.1} parent=39 // pred_check
          %p264 = pneg %p45
        $region42: #{tpu_custom_call.1} parent=39 // pred_check_branch
          %266 = sbr.rel (%p264) target = $region44
        $region43: #{tpu_custom_call.1} parent=39 // pred_region
          %268 = dma.done %s260, 4096
        $region44: #{tpu_custom_call.1} parent=39 // pred_fallthru
          _
        // Predicated region
        $region45: #{tpu_custom_call.1} parent=39 // pred_check
          %p269 = pneg %p66
        $region46: #{tpu_custom_call.1} parent=39 // pred_check_branch
          %271 = sbr.rel (%p269) target = $region48
        $region47: #{tpu_custom_call.1} parent=39 // pred_region
          %273 = dma.done [#allocation6], 1024
        $region48: #{tpu_custom_call.1} parent=39 // pred_fallthru
          _
        // Predicated region
        $region49: #{tpu_custom_call.1} parent=39 // pred_check
          %p274 = pneg %p87
        $region50: #{tpu_custom_call.1} parent=39 // pred_check_branch
          %276 = sbr.rel (%p274) target = $region52
        $region51: #{tpu_custom_call.1} parent=39 // pred_region
          %278 = dma.done [#allocation6], 1024
        $region52: #{tpu_custom_call.1} parent=39 // pred_fallthru
          _
        // Predicated region
        $region53: #{tpu_custom_call.1} parent=39 // pred_check
          %p279 = pneg %p108
        $region54: #{tpu_custom_call.1} parent=39 // pred_check_branch
          %281 = sbr.rel (%p279) target = $region56
        $region55: #{tpu_custom_call.1} parent=39 // pred_region
          %283 = dma.done [#allocation9], 1024
        $region56: #{tpu_custom_call.1} parent=39 // pred_fallthru
          _
        // Predicated region
        $region57: #{tpu_custom_call.1} parent=39 // pred_check
          %p284 = pneg %p129
        $region58: #{tpu_custom_call.1} parent=39 // pred_check_branch
          %286 = sbr.rel (%p284) target = $region60
        $region59: #{tpu_custom_call.1} parent=39 // pred_region
          %288 = dma.done [#allocation9], 1024
        $region60: #{tpu_custom_call.1} parent=39 // pred_fallthru
          _
        %s289 = sand.u32 %s32, 1
        %s290 = scalar_lea.sflag [#allocation3], %s289
        %s291 = sand.u32 %s32, 1
        %s292 = smul.addr %s291, 256
        %s293 = scalar_lea.vmem [#allocation2], %s292
        %p294 = pneg %p45
        %p295 = pneg %p42
        %p296 = pneg %p66
        %p297 = pneg %p63
        %p298 = pneg %p87
        %p299 = pneg %p84
        %p300 = pneg %p108
        %p301 = pneg %p105
        %p302 = pneg %p129
        %p303 = pneg %p126
        %p304 = pneg %p155
        %p305 = pneg %p152
        %s306 = sand.u32 %s142, 1
        %s307 = scalar_lea.sflag [#allocation4], %s306
        %s308 = sand.u32 %s142, 1
        %s309 = smul.addr %s308, 256
        %s310 = scalar_lea.vmem [#allocation11], %s309
        %s311 = smul.u32 32, %s24
        %s312 = smul.u32 32, %s24
        %v313 = vld [vmem:[%s263] sm:$0xff]
        %v314 = vld [vmem:[%s263 + $0x8] sm:$0xff]
        %v315 = vld [vmem:[%s263 + $0x10] sm:$0xff]
        %v316 = vld [vmem:[%s263 + $0x18] sm:$0xff]
        %v317 = vld [vmem:[%s263 + $0x20] sm:$0xff]
        %v318 = vld [vmem:[%s263 + $0x28] sm:$0xff]
        %v319 = vld [vmem:[%s263 + $0x30] sm:$0xff]
        %v320 = vld [vmem:[%s263 + $0x38] sm:$0xff]
        %v321 = vld [vmem:[%s263 + $0x40] sm:$0xff]
        %v322 = vld [vmem:[%s263 + $0x48] sm:$0xff]
        %v323 = vld [vmem:[%s263 + $0x50] sm:$0xff]
        %v324 = vld [vmem:[%s263 + $0x58] sm:$0xff]
        %v325 = vld [vmem:[%s263 + $0x60] sm:$0xff]
        %v326 = vld [vmem:[%s263 + $0x68] sm:$0xff]
        %v327 = vld [vmem:[%s263 + $0x70] sm:$0xff]
        %v328 = vld [vmem:[%s263 + $0x78] sm:$0xff]
        %v329 = vld [vmem:[%s263 + $0x80] sm:$0xff]
        %v330 = vld [vmem:[%s263 + $0x88] sm:$0xff]
        %v331 = vld [vmem:[%s263 + $0x90] sm:$0xff]
        %v332 = vld [vmem:[%s263 + $0x98] sm:$0xff]
        %v333 = vld [vmem:[%s263 + $0xa0] sm:$0xff]
        %v334 = vld [vmem:[%s263 + $0xa8] sm:$0xff]
        %v335 = vld [vmem:[%s263 + $0xb0] sm:$0xff]
        %v336 = vld [vmem:[%s263 + $0xb8] sm:$0xff]
        %v337 = vld [vmem:[%s263 + $0xc0] sm:$0xff]
        %v338 = vld [vmem:[%s263 + $0xc8] sm:$0xff]
        %v339 = vld [vmem:[%s263 + $0xd0] sm:$0xff]
        %v340 = vld [vmem:[%s263 + $0xd8] sm:$0xff]
        %v341 = vld [vmem:[%s263 + $0xe0] sm:$0xff]
        %v342 = vld [vmem:[%s263 + $0xe8] sm:$0xff]
        %v343 = vld [vmem:[%s263 + $0xf0] sm:$0xff]
        %v344 = vld [vmem:[%s263 + $0xf8] sm:$0xff]
        %v345 = vpack.c.bf16 %v314, %v313
        %v346 = vpack.c.bf16 %v316, %v315
        %v347 = vpack.c.bf16 %v318, %v317
        %v348 = vpack.c.bf16 %v320, %v319
        %v349 = vpack.c.bf16 %v322, %v321
        %v350 = vpack.c.bf16 %v324, %v323
        %v351 = vpack.c.bf16 %v326, %v325
        %v352 = vpack.c.bf16 %v328, %v327
        %v353 = vpack.c.bf16 %v330, %v329
        %v354 = vpack.c.bf16 %v332, %v331
        %v355 = vpack.c.bf16 %v334, %v333
        %v356 = vpack.c.bf16 %v336, %v335
        %v357 = vpack.c.bf16 %v338, %v337
        %v358 = vpack.c.bf16 %v340, %v339
        %v359 = vpack.c.bf16 %v342, %v341
        %v360 = vpack.c.bf16 %v344, %v343
        %v361 = vld [vmem:[#allocation5] sm:$0xf]
        %v362 = vld [vmem:[#allocation5 + $0x4] sm:$0xf]
        %v363 = vld [vmem:[#allocation5 + $0x8] sm:$0xf]
        %v364 = vld [vmem:[#allocation5 + $0xc] sm:$0xf]
        %v365 = vld [vmem:[#allocation5 + $0x10] sm:$0xf]
        %v366 = vld [vmem:[#allocation5 + $0x14] sm:$0xf]
        %v367 = vld [vmem:[#allocation5 + $0x18] sm:$0xf]
        %v368 = vld [vmem:[#allocation5 + $0x1c] sm:$0xf]
        %v369 = vld [vmem:[#allocation5 + $0x20] sm:$0xf]
        %v370 = vld [vmem:[#allocation5 + $0x24] sm:$0xf]
        %v371 = vld [vmem:[#allocation5 + $0x28] sm:$0xf]
        %v372 = vld [vmem:[#allocation5 + $0x2c] sm:$0xf]
        %v373 = vld [vmem:[#allocation5 + $0x30] sm:$0xf]
        %v374 = vld [vmem:[#allocation5 + $0x34] sm:$0xf]
        %v375 = vld [vmem:[#allocation5 + $0x38] sm:$0xf]
        %v376 = vld [vmem:[#allocation5 + $0x3c] sm:$0xf]
        %v393 = vunpack.c.l.b16 %v361
        %v394 = vunpack.c.l.b16 %v362
        %v395 = vunpack.c.l.b16 %v363
        %v396 = vunpack.c.l.b16 %v364
        %v397 = vunpack.c.l.b16 %v365
        %v398 = vunpack.c.l.b16 %v366
        %v399 = vunpack.c.l.b16 %v367
        %v400 = vunpack.c.l.b16 %v368
        %v401 = vunpack.c.l.b16 %v369
        %v402 = vunpack.c.l.b16 %v370
        %v403 = vunpack.c.l.b16 %v371
        %v404 = vunpack.c.l.b16 %v372
        %v405 = vunpack.c.l.b16 %v373
        %v406 = vunpack.c.l.b16 %v374
        %v407 = vunpack.c.l.b16 %v375
        %v408 = vunpack.c.l.b16 %v376
        %v409 = vpack.c.b16 %v394, %v393
        %v410 = vpack.c.b16 %v396, %v395
        %v411 = vpack.c.b16 %v398, %v397
        %v412 = vpack.c.b16 %v400, %v399
        %v413 = vpack.c.b16 %v402, %v401
        %v414 = vpack.c.b16 %v404, %v403
        %v415 = vpack.c.b16 %v406, %v405
        %v416 = vpack.c.b16 %v408, %v407
        %425 = vmatpush.bf16.msra.mxu0 %v416
        %426 = vmatpush.bf16.msra.mxu0 %v415
        %427 = vmatpush.bf16.msra.mxu0 %v414
        %428 = vmatpush.bf16.msra.mxu0 %v413
        %429 = vmatpush.bf16.msra.mxu0 %v412
        %430 = vmatpush.bf16.msra.mxu0 %v411
        %431 = vmatpush.bf16.msra.mxu0 %v410
        %432 = vmatpush.bf16.msra.mxu0 %v409
        %433 = vmatmul.bf16.gmra.mxu0 %v345
        %v434 = vpop.f32.mrf.mxu0
        %v435 = vadd.f32 0.0, %v434
        %v436 = vpop.f32.mrf.mxu0
        %v437 = vadd.f32 0.0, %v436
        %438 = vmatmul.bf16.gmra.mxu0 %v346
        %v439 = vpop.f32.mrf.mxu0
        %v440 = vadd.f32 0.0, %v439
        %v441 = vpop.f32.mrf.mxu0
        %v442 = vadd.f32 0.0, %v441
        %443 = vmatmul.bf16.gmra.mxu0 %v347
        %v444 = vpop.f32.mrf.mxu0
        %v445 = vadd.f32 0.0, %v444
        %v446 = vpop.f32.mrf.mxu0
        %v447 = vadd.f32 0.0, %v446
        %448 = vmatmul.bf16.gmra.mxu0 %v348
        %v449 = vpop.f32.mrf.mxu0
        %v450 = vadd.f32 0.0, %v449
        %v451 = vpop.f32.mrf.mxu0
        %v452 = vadd.f32 0.0, %v451
        %453 = vmatmul.bf16.gmra.mxu0 %v349
        %v454 = vpop.f32.mrf.mxu0
        %v455 = vadd.f32 0.0, %v454
        %v456 = vpop.f32.mrf.mxu0
        %v457 = vadd.f32 0.0, %v456
        %458 = vmatmul.bf16.gmra.mxu0 %v350
        %v459 = vpop.f32.mrf.mxu0
        %v460 = vadd.f32 0.0, %v459
        %v461 = vpop.f32.mrf.mxu0
        %v462 = vadd.f32 0.0, %v461
        %463 = vmatmul.bf16.gmra.mxu0 %v351
        %v464 = vpop.f32.mrf.mxu0
        %v465 = vadd.f32 0.0, %v464
        %v466 = vpop.f32.mrf.mxu0
        %v467 = vadd.f32 0.0, %v466
        %468 = vmatmul.bf16.gmra.mxu0 %v352
        %v469 = vpop.f32.mrf.mxu0
        %v470 = vadd.f32 0.0, %v469
        %v471 = vpop.f32.mrf.mxu0
        %v472 = vadd.f32 0.0, %v471
        %473 = vmatmul.bf16.gmra.mxu0 %v353
        %v474 = vpop.f32.mrf.mxu0
        %v475 = vadd.f32 0.0, %v474
        %v476 = vpop.f32.mrf.mxu0
        %v477 = vadd.f32 0.0, %v476
        %478 = vmatmul.bf16.gmra.mxu0 %v354
        %v479 = vpop.f32.mrf.mxu0
        %v480 = vadd.f32 0.0, %v479
        %v481 = vpop.f32.mrf.mxu0
        %v482 = vadd.f32 0.0, %v481
        %483 = vmatmul.bf16.gmra.mxu0 %v355
        %v484 = vpop.f32.mrf.mxu0
        %v485 = vadd.f32 0.0, %v484
        %v486 = vpop.f32.mrf.mxu0
        %v487 = vadd.f32 0.0, %v486
        %488 = vmatmul.bf16.gmra.mxu0 %v356
        %v489 = vpop.f32.mrf.mxu0
        %v490 = vadd.f32 0.0, %v489
        %v491 = vpop.f32.mrf.mxu0
        %v492 = vadd.f32 0.0, %v491
        %493 = vmatmul.bf16.gmra.mxu0 %v357
        %v494 = vpop.f32.mrf.mxu0
        %v495 = vadd.f32 0.0, %v494
        %v496 = vpop.f32.mrf.mxu0
        %v497 = vadd.f32 0.0, %v496
        %498 = vmatmul.bf16.gmra.mxu0 %v358
        %v499 = vpop.f32.mrf.mxu0
        %v500 = vadd.f32 0.0, %v499
        %v501 = vpop.f32.mrf.mxu0
        %v502 = vadd.f32 0.0, %v501
        %503 = vmatmul.bf16.gmra.mxu0 %v359
        %v504 = vpop.f32.mrf.mxu0
        %v505 = vadd.f32 0.0, %v504
        %v506 = vpop.f32.mrf.mxu0
        %v507 = vadd.f32 0.0, %v506
        %508 = vmatmul.bf16.gmra.mxu0 %v360
        %v509 = vpop.f32.mrf.mxu0
        %v510 = vadd.f32 0.0, %v509
        %v511 = vpop.f32.mrf.mxu0
        %v512 = vadd.f32 0.0, %v511
        %513 = vdwg.mxu0
        %v514 = vmax.f32 %v435, 0.0
        %v515 = vmax.f32 %v437, 0.0
        %v516 = vmax.f32 %v440, 0.0
        %v517 = vmax.f32 %v442, 0.0
        %v518 = vmax.f32 %v445, 0.0
        %v519 = vmax.f32 %v447, 0.0
        %v520 = vmax.f32 %v450, 0.0
        %v521 = vmax.f32 %v452, 0.0
        %v522 = vmax.f32 %v455, 0.0
        %v523 = vmax.f32 %v457, 0.0
        %v524 = vmax.f32 %v460, 0.0
        %v525 = vmax.f32 %v462, 0.0
        %v526 = vmax.f32 %v465, 0.0
        %v527 = vmax.f32 %v467, 0.0
        %v528 = vmax.f32 %v470, 0.0
        %v529 = vmax.f32 %v472, 0.0
        %v530 = vmax.f32 %v475, 0.0
        %v531 = vmax.f32 %v477, 0.0
        %v532 = vmax.f32 %v480, 0.0
        %v533 = vmax.f32 %v482, 0.0
        %v534 = vmax.f32 %v485, 0.0
        %v535 = vmax.f32 %v487, 0.0
        %v536 = vmax.f32 %v490, 0.0
        %v537 = vmax.f32 %v492, 0.0
        %v538 = vmax.f32 %v495, 0.0
        %v539 = vmax.f32 %v497, 0.0
        %v540 = vmax.f32 %v500, 0.0
        %v541 = vmax.f32 %v502, 0.0
        %v542 = vmax.f32 %v505, 0.0
        %v543 = vmax.f32 %v507, 0.0
        %v544 = vmax.f32 %v510, 0.0
        %v545 = vmax.f32 %v512, 0.0
        %v546 = vpack.c.bf16 %v515, %v514
        %v547 = vpack.c.bf16 %v517, %v516
        %v548 = vpack.c.bf16 %v519, %v518
        %v549 = vpack.c.bf16 %v521, %v520
        %v550 = vpack.c.bf16 %v523, %v522
        %v551 = vpack.c.bf16 %v525, %v524
        %v552 = vpack.c.bf16 %v527, %v526
        %v553 = vpack.c.bf16 %v529, %v528
        %v554 = vpack.c.bf16 %v531, %v530
        %v555 = vpack.c.bf16 %v533, %v532
        %v556 = vpack.c.bf16 %v535, %v534
        %v557 = vpack.c.bf16 %v537, %v536
        %v558 = vpack.c.bf16 %v539, %v538
        %v559 = vpack.c.bf16 %v541, %v540
        %v560 = vpack.c.bf16 %v543, %v542
        %v561 = vpack.c.bf16 %v545, %v544
        %v562 = vld [vmem:[#allocation7] sm:$0xf]
        %v563 = vld [vmem:[#allocation7 + $0x4] sm:$0xf]
        %v564 = vld [vmem:[#allocation7 + $0x8] sm:$0xf]
        %v565 = vld [vmem:[#allocation7 + $0xc] sm:$0xf]
        %v566 = vld [vmem:[#allocation7 + $0x10] sm:$0xf]
        %v567 = vld [vmem:[#allocation7 + $0x14] sm:$0xf]
        %v568 = vld [vmem:[#allocation7 + $0x18] sm:$0xf]
        %v569 = vld [vmem:[#allocation7 + $0x1c] sm:$0xf]
        %v570 = vld [vmem:[#allocation7 + $0x20] sm:$0xf]
        %v571 = vld [vmem:[#allocation7 + $0x24] sm:$0xf]
        %v572 = vld [vmem:[#allocation7 + $0x28] sm:$0xf]
        %v573 = vld [vmem:[#allocation7 + $0x2c] sm:$0xf]
        %v574 = vld [vmem:[#allocation7 + $0x30] sm:$0xf]
        %v575 = vld [vmem:[#allocation7 + $0x34] sm:$0xf]
        %v576 = vld [vmem:[#allocation7 + $0x38] sm:$0xf]
        %v577 = vld [vmem:[#allocation7 + $0x3c] sm:$0xf]
        %v594 = vunpack.c.l.b16 %v562
        %v595 = vunpack.c.l.b16 %v563
        %v596 = vunpack.c.l.b16 %v564
        %v597 = vunpack.c.l.b16 %v565
        %v598 = vunpack.c.l.b16 %v566
        %v599 = vunpack.c.l.b16 %v567
        %v600 = vunpack.c.l.b16 %v568
        %v601 = vunpack.c.l.b16 %v569
        %v602 = vunpack.c.l.b16 %v570
        %v603 = vunpack.c.l.b16 %v571
        %v604 = vunpack.c.l.b16 %v572
        %v605 = vunpack.c.l.b16 %v573
        %v606 = vunpack.c.l.b16 %v574
        %v607 = vunpack.c.l.b16 %v575
        %v608 = vunpack.c.l.b16 %v576
        %v609 = vunpack.c.l.b16 %v577
        %v610 = vpack.c.b16 %v595, %v594
        %v611 = vpack.c.b16 %v597, %v596
        %v612 = vpack.c.b16 %v599, %v598
        %v613 = vpack.c.b16 %v601, %v600
        %v614 = vpack.c.b16 %v603, %v602
        %v615 = vpack.c.b16 %v605, %v604
        %v616 = vpack.c.b16 %v607, %v606
        %v617 = vpack.c.b16 %v609, %v608
        %626 = vmatpush.bf16.msra.mxu0 %v617
        %627 = vmatpush.bf16.msra.mxu0 %v616
        %628 = vmatpush.bf16.msra.mxu0 %v615
        %629 = vmatpush.bf16.msra.mxu0 %v614
        %630 = vmatpush.bf16.msra.mxu0 %v613
        %631 = vmatpush.bf16.msra.mxu0 %v612
        %632 = vmatpush.bf16.msra.mxu0 %v611
        %633 = vmatpush.bf16.msra.mxu0 %v610
        %634 = vmatmul.bf16.gmra.mxu0 %v546
        %v635 = vpop.f32.mrf.mxu0
        %v636 = vadd.f32 0.0, %v635
        %v637 = vpop.f32.mrf.mxu0
        %v638 = vadd.f32 0.0, %v637
        %639 = vmatmul.bf16.gmra.mxu0 %v547
        %v640 = vpop.f32.mrf.mxu0
        %v641 = vadd.f32 0.0, %v640
        %v642 = vpop.f32.mrf.mxu0
        %v643 = vadd.f32 0.0, %v642
        %644 = vmatmul.bf16.gmra.mxu0 %v548
        %v645 = vpop.f32.mrf.mxu0
        %v646 = vadd.f32 0.0, %v645
        %v647 = vpop.f32.mrf.mxu0
        %v648 = vadd.f32 0.0, %v647
        %649 = vmatmul.bf16.gmra.mxu0 %v549
        %v650 = vpop.f32.mrf.mxu0
        %v651 = vadd.f32 0.0, %v650
        %v652 = vpop.f32.mrf.mxu0
        %v653 = vadd.f32 0.0, %v652
        %654 = vmatmul.bf16.gmra.mxu0 %v550
        %v655 = vpop.f32.mrf.mxu0
        %v656 = vadd.f32 0.0, %v655
        %v657 = vpop.f32.mrf.mxu0
        %v658 = vadd.f32 0.0, %v657
        %659 = vmatmul.bf16.gmra.mxu0 %v551
        %v660 = vpop.f32.mrf.mxu0
        %v661 = vadd.f32 0.0, %v660
        %v662 = vpop.f32.mrf.mxu0
        %v663 = vadd.f32 0.0, %v662
        %664 = vmatmul.bf16.gmra.mxu0 %v552
        %v665 = vpop.f32.mrf.mxu0
        %v666 = vadd.f32 0.0, %v665
        %v667 = vpop.f32.mrf.mxu0
        %v668 = vadd.f32 0.0, %v667
        %669 = vmatmul.bf16.gmra.mxu0 %v553
        %v670 = vpop.f32.mrf.mxu0
        %v671 = vadd.f32 0.0, %v670
        %v672 = vpop.f32.mrf.mxu0
        %v673 = vadd.f32 0.0, %v672
        %674 = vmatmul.bf16.gmra.mxu0 %v554
        %v675 = vpop.f32.mrf.mxu0
        %v676 = vadd.f32 0.0, %v675
        %v677 = vpop.f32.mrf.mxu0
        %v678 = vadd.f32 0.0, %v677
        %679 = vmatmul.bf16.gmra.mxu0 %v555
        %v680 = vpop.f32.mrf.mxu0
        %v681 = vadd.f32 0.0, %v680
        %v682 = vpop.f32.mrf.mxu0
        %v683 = vadd.f32 0.0, %v682
        %684 = vmatmul.bf16.gmra.mxu0 %v556
        %v685 = vpop.f32.mrf.mxu0
        %v686 = vadd.f32 0.0, %v685
        %v687 = vpop.f32.mrf.mxu0
        %v688 = vadd.f32 0.0, %v687
        %689 = vmatmul.bf16.gmra.mxu0 %v557
        %v690 = vpop.f32.mrf.mxu0
        %v691 = vadd.f32 0.0, %v690
        %v692 = vpop.f32.mrf.mxu0
        %v693 = vadd.f32 0.0, %v692
        %694 = vmatmul.bf16.gmra.mxu0 %v558
        %v695 = vpop.f32.mrf.mxu0
        %v696 = vadd.f32 0.0, %v695
        %v697 = vpop.f32.mrf.mxu0
        %v698 = vadd.f32 0.0, %v697
        %699 = vmatmul.bf16.gmra.mxu0 %v559
        %v700 = vpop.f32.mrf.mxu0
        %v701 = vadd.f32 0.0, %v700
        %v702 = vpop.f32.mrf.mxu0
        %v703 = vadd.f32 0.0, %v702
        %704 = vmatmul.bf16.gmra.mxu0 %v560
        %v705 = vpop.f32.mrf.mxu0
        %v706 = vadd.f32 0.0, %v705
        %v707 = vpop.f32.mrf.mxu0
        %v708 = vadd.f32 0.0, %v707
        %709 = vmatmul.bf16.gmra.mxu0 %v561
        %v710 = vpop.f32.mrf.mxu0
        %v711 = vadd.f32 0.0, %v710
        %v712 = vpop.f32.mrf.mxu0
        %v713 = vadd.f32 0.0, %v712
        %714 = vdwg.mxu0
        %v715 = vmax.f32 %v636, 0.0
        %v716 = vmax.f32 %v638, 0.0
        %v717 = vmax.f32 %v641, 0.0
        %v718 = vmax.f32 %v643, 0.0
        %v719 = vmax.f32 %v646, 0.0
        %v720 = vmax.f32 %v648, 0.0
        %v721 = vmax.f32 %v651, 0.0
        %v722 = vmax.f32 %v653, 0.0
        %v723 = vmax.f32 %v656, 0.0
        %v724 = vmax.f32 %v658, 0.0
        %v725 = vmax.f32 %v661, 0.0
        %v726 = vmax.f32 %v663, 0.0
        %v727 = vmax.f32 %v666, 0.0
        %v728 = vmax.f32 %v668, 0.0
        %v729 = vmax.f32 %v671, 0.0
        %v730 = vmax.f32 %v673, 0.0
        %v731 = vmax.f32 %v676, 0.0
        %v732 = vmax.f32 %v678, 0.0
        %v733 = vmax.f32 %v681, 0.0
        %v734 = vmax.f32 %v683, 0.0
        %v735 = vmax.f32 %v686, 0.0
        %v736 = vmax.f32 %v688, 0.0
        %v737 = vmax.f32 %v691, 0.0
        %v738 = vmax.f32 %v693, 0.0
        %v739 = vmax.f32 %v696, 0.0
        %v740 = vmax.f32 %v698, 0.0
        %v741 = vmax.f32 %v701, 0.0
        %v742 = vmax.f32 %v703, 0.0
        %v743 = vmax.f32 %v706, 0.0
        %v744 = vmax.f32 %v708, 0.0
        %v745 = vmax.f32 %v711, 0.0
        %v746 = vmax.f32 %v713, 0.0
        %v747 = vpack.c.bf16 %v716, %v715
        %v748 = vpack.c.bf16 %v718, %v717
        %v749 = vpack.c.bf16 %v720, %v719
        %v750 = vpack.c.bf16 %v722, %v721
        %v751 = vpack.c.bf16 %v724, %v723
        %v752 = vpack.c.bf16 %v726, %v725
        %v753 = vpack.c.bf16 %v728, %v727
        %v754 = vpack.c.bf16 %v730, %v729
        %v755 = vpack.c.bf16 %v732, %v731
        %v756 = vpack.c.bf16 %v734, %v733
        %v757 = vpack.c.bf16 %v736, %v735
        %v758 = vpack.c.bf16 %v738, %v737
        %v759 = vpack.c.bf16 %v740, %v739
        %v760 = vpack.c.bf16 %v742, %v741
        %v761 = vpack.c.bf16 %v744, %v743
        %v762 = vpack.c.bf16 %v746, %v745
        %v763 = vld [vmem:[#allocation8] sm:$0xf]
        %v764 = vld [vmem:[#allocation8 + $0x4] sm:$0xf]
        %v765 = vld [vmem:[#allocation8 + $0x8] sm:$0xf]
        %v766 = vld [vmem:[#allocation8 + $0xc] sm:$0xf]
        %v767 = vld [vmem:[#allocation8 + $0x10] sm:$0xf]
        %v768 = vld [vmem:[#allocation8 + $0x14] sm:$0xf]
        %v769 = vld [vmem:[#allocation8 + $0x18] sm:$0xf]
        %v770 = vld [vmem:[#allocation8 + $0x1c] sm:$0xf]
        %v771 = vld [vmem:[#allocation8 + $0x20] sm:$0xf]
        %v772 = vld [vmem:[#allocation8 + $0x24] sm:$0xf]
        %v773 = vld [vmem:[#allocation8 + $0x28] sm:$0xf]
        %v774 = vld [vmem:[#allocation8 + $0x2c] sm:$0xf]
        %v775 = vld [vmem:[#allocation8 + $0x30] sm:$0xf]
        %v776 = vld [vmem:[#allocation8 + $0x34] sm:$0xf]
        %v777 = vld [vmem:[#allocation8 + $0x38] sm:$0xf]
        %v778 = vld [vmem:[#allocation8 + $0x3c] sm:$0xf]
        %v795 = vunpack.c.l.b16 %v763
        %v796 = vunpack.c.l.b16 %v764
        %v797 = vunpack.c.l.b16 %v765
        %v798 = vunpack.c.l.b16 %v766
        %v799 = vunpack.c.l.b16 %v767
        %v800 = vunpack.c.l.b16 %v768
        %v801 = vunpack.c.l.b16 %v769
        %v802 = vunpack.c.l.b16 %v770
        %v803 = vunpack.c.l.b16 %v771
        %v804 = vunpack.c.l.b16 %v772
        %v805 = vunpack.c.l.b16 %v773
        %v806 = vunpack.c.l.b16 %v774
        %v807 = vunpack.c.l.b16 %v775
        %v808 = vunpack.c.l.b16 %v776
        %v809 = vunpack.c.l.b16 %v777
        %v810 = vunpack.c.l.b16 %v778
        %v811 = vpack.c.b16 %v796, %v795
        %v812 = vpack.c.b16 %v798, %v797
        %v813 = vpack.c.b16 %v800, %v799
        %v814 = vpack.c.b16 %v802, %v801
        %v815 = vpack.c.b16 %v804, %v803
        %v816 = vpack.c.b16 %v806, %v805
        %v817 = vpack.c.b16 %v808, %v807
        %v818 = vpack.c.b16 %v810, %v809
        %827 = vmatpush.bf16.msra.mxu0 %v818
        %828 = vmatpush.bf16.msra.mxu0 %v817
        %829 = vmatpush.bf16.msra.mxu0 %v816
        %830 = vmatpush.bf16.msra.mxu0 %v815
        %831 = vmatpush.bf16.msra.mxu0 %v814
        %832 = vmatpush.bf16.msra.mxu0 %v813
        %833 = vmatpush.bf16.msra.mxu0 %v812
        %834 = vmatpush.bf16.msra.mxu0 %v811
        %835 = vmatmul.bf16.gmra.mxu0 %v747
        %v836 = vpop.f32.mrf.mxu0
        %v837 = vadd.f32 0.0, %v836
        %v838 = vpop.f32.mrf.mxu0
        %v839 = vadd.f32 0.0, %v838
        %840 = vmatmul.bf16.gmra.mxu0 %v748
        %v841 = vpop.f32.mrf.mxu0
        %v842 = vadd.f32 0.0, %v841
        %v843 = vpop.f32.mrf.mxu0
        %v844 = vadd.f32 0.0, %v843
        %845 = vmatmul.bf16.gmra.mxu0 %v749
        %v846 = vpop.f32.mrf.mxu0
        %v847 = vadd.f32 0.0, %v846
        %v848 = vpop.f32.mrf.mxu0
        %v849 = vadd.f32 0.0, %v848
        %850 = vmatmul.bf16.gmra.mxu0 %v750
        %v851 = vpop.f32.mrf.mxu0
        %v852 = vadd.f32 0.0, %v851
        %v853 = vpop.f32.mrf.mxu0
        %v854 = vadd.f32 0.0, %v853
        %855 = vmatmul.bf16.gmra.mxu0 %v751
        %v856 = vpop.f32.mrf.mxu0
        %v857 = vadd.f32 0.0, %v856
        %v858 = vpop.f32.mrf.mxu0
        %v859 = vadd.f32 0.0, %v858
        %860 = vmatmul.bf16.gmra.mxu0 %v752
        %v861 = vpop.f32.mrf.mxu0
        %v862 = vadd.f32 0.0, %v861
        %v863 = vpop.f32.mrf.mxu0
        %v864 = vadd.f32 0.0, %v863
        %865 = vmatmul.bf16.gmra.mxu0 %v753
        %v866 = vpop.f32.mrf.mxu0
        %v867 = vadd.f32 0.0, %v866
        %v868 = vpop.f32.mrf.mxu0
        %v869 = vadd.f32 0.0, %v868
        %870 = vmatmul.bf16.gmra.mxu0 %v754
        %v871 = vpop.f32.mrf.mxu0
        %v872 = vadd.f32 0.0, %v871
        %v873 = vpop.f32.mrf.mxu0
        %v874 = vadd.f32 0.0, %v873
        %875 = vmatmul.bf16.gmra.mxu0 %v755
        %v876 = vpop.f32.mrf.mxu0
        %v877 = vadd.f32 0.0, %v876
        %v878 = vpop.f32.mrf.mxu0
        %v879 = vadd.f32 0.0, %v878
        %880 = vmatmul.bf16.gmra.mxu0 %v756
        %v881 = vpop.f32.mrf.mxu0
        %v882 = vadd.f32 0.0, %v881
        %v883 = vpop.f32.mrf.mxu0
        %v884 = vadd.f32 0.0, %v883
        %885 = vmatmul.bf16.gmra.mxu0 %v757
        %v886 = vpop.f32.mrf.mxu0
        %v887 = vadd.f32 0.0, %v886
        %v888 = vpop.f32.mrf.mxu0
        %v889 = vadd.f32 0.0, %v888
        %890 = vmatmul.bf16.gmra.mxu0 %v758
        %v891 = vpop.f32.mrf.mxu0
        %v892 = vadd.f32 0.0, %v891
        %v893 = vpop.f32.mrf.mxu0
        %v894 = vadd.f32 0.0, %v893
        %895 = vmatmul.bf16.gmra.mxu0 %v759
        %v896 = vpop.f32.mrf.mxu0
        %v897 = vadd.f32 0.0, %v896
        %v898 = vpop.f32.mrf.mxu0
        %v899 = vadd.f32 0.0, %v898
        %900 = vmatmul.bf16.gmra.mxu0 %v760
        %v901 = vpop.f32.mrf.mxu0
        %v902 = vadd.f32 0.0, %v901
        %v903 = vpop.f32.mrf.mxu0
        %v904 = vadd.f32 0.0, %v903
        %905 = vmatmul.bf16.gmra.mxu0 %v761
        %v906 = vpop.f32.mrf.mxu0
        %v907 = vadd.f32 0.0, %v906
        %v908 = vpop.f32.mrf.mxu0
        %v909 = vadd.f32 0.0, %v908
        %910 = vmatmul.bf16.gmra.mxu0 %v762
        %v911 = vpop.f32.mrf.mxu0
        %v912 = vadd.f32 0.0, %v911
        %v913 = vpop.f32.mrf.mxu0
        %v914 = vadd.f32 0.0, %v913
        %915 = vdwg.mxu0
        %v916 = vmax.f32 %v837, 0.0
        %v917 = vmax.f32 %v839, 0.0
        %v918 = vmax.f32 %v842, 0.0
        %v919 = vmax.f32 %v844, 0.0
        %v920 = vmax.f32 %v847, 0.0
        %v921 = vmax.f32 %v849, 0.0
        %v922 = vmax.f32 %v852, 0.0
        %v923 = vmax.f32 %v854, 0.0
        %v924 = vmax.f32 %v857, 0.0
        %v925 = vmax.f32 %v859, 0.0
        %v926 = vmax.f32 %v862, 0.0
        %v927 = vmax.f32 %v864, 0.0
        %v928 = vmax.f32 %v867, 0.0
        %v929 = vmax.f32 %v869, 0.0
        %v930 = vmax.f32 %v872, 0.0
        %v931 = vmax.f32 %v874, 0.0
        %v932 = vmax.f32 %v877, 0.0
        %v933 = vmax.f32 %v879, 0.0
        %v934 = vmax.f32 %v882, 0.0
        %v935 = vmax.f32 %v884, 0.0
        %v936 = vmax.f32 %v887, 0.0
        %v937 = vmax.f32 %v889, 0.0
        %v938 = vmax.f32 %v892, 0.0
        %v939 = vmax.f32 %v894, 0.0
        %v940 = vmax.f32 %v897, 0.0
        %v941 = vmax.f32 %v899, 0.0
        %v942 = vmax.f32 %v902, 0.0
        %v943 = vmax.f32 %v904, 0.0
        %v944 = vmax.f32 %v907, 0.0
        %v945 = vmax.f32 %v909, 0.0
        %v946 = vmax.f32 %v912, 0.0
        %v947 = vmax.f32 %v914, 0.0
        %v948 = vpack.c.bf16 %v917, %v916
        %v949 = vpack.c.bf16 %v919, %v918
        %v950 = vpack.c.bf16 %v921, %v920
        %v951 = vpack.c.bf16 %v923, %v922
        %v952 = vpack.c.bf16 %v925, %v924
        %v953 = vpack.c.bf16 %v927, %v926
        %v954 = vpack.c.bf16 %v929, %v928
        %v955 = vpack.c.bf16 %v931, %v930
        %v956 = vpack.c.bf16 %v933, %v932
        %v957 = vpack.c.bf16 %v935, %v934
        %v958 = vpack.c.bf16 %v937, %v936
        %v959 = vpack.c.bf16 %v939, %v938
        %v960 = vpack.c.bf16 %v941, %v940
        %v961 = vpack.c.bf16 %v943, %v942
        %v962 = vpack.c.bf16 %v945, %v944
        %v963 = vpack.c.bf16 %v947, %v946
        %v964 = vld [vmem:[#allocation10] sm:$0xf]
        %v965 = vld [vmem:[#allocation10 + $0x4] sm:$0xf]
        %v966 = vld [vmem:[#allocation10 + $0x8] sm:$0xf]
        %v967 = vld [vmem:[#allocation10 + $0xc] sm:$0xf]
        %v968 = vld [vmem:[#allocation10 + $0x10] sm:$0xf]
        %v969 = vld [vmem:[#allocation10 + $0x14] sm:$0xf]
        %v970 = vld [vmem:[#allocation10 + $0x18] sm:$0xf]
        %v971 = vld [vmem:[#allocation10 + $0x1c] sm:$0xf]
        %v972 = vld [vmem:[#allocation10 + $0x20] sm:$0xf]
        %v973 = vld [vmem:[#allocation10 + $0x24] sm:$0xf]
        %v974 = vld [vmem:[#allocation10 + $0x28] sm:$0xf]
        %v975 = vld [vmem:[#allocation10 + $0x2c] sm:$0xf]
        %v976 = vld [vmem:[#allocation10 + $0x30] sm:$0xf]
        %v977 = vld [vmem:[#allocation10 + $0x34] sm:$0xf]
        %v978 = vld [vmem:[#allocation10 + $0x38] sm:$0xf]
        %v979 = vld [vmem:[#allocation10 + $0x3c] sm:$0xf]
        %v996 = vunpack.c.l.b16 %v964
        %v997 = vunpack.c.l.b16 %v965
        %v998 = vunpack.c.l.b16 %v966
        %v999 = vunpack.c.l.b16 %v967
        %v1000 = vunpack.c.l.b16 %v968
        %v1001 = vunpack.c.l.b16 %v969
        %v1002 = vunpack.c.l.b16 %v970
        %v1003 = vunpack.c.l.b16 %v971
        %v1004 = vunpack.c.l.b16 %v972
        %v1005 = vunpack.c.l.b16 %v973
        %v1006 = vunpack.c.l.b16 %v974
        %v1007 = vunpack.c.l.b16 %v975
        %v1008 = vunpack.c.l.b16 %v976
        %v1009 = vunpack.c.l.b16 %v977
        %v1010 = vunpack.c.l.b16 %v978
        %v1011 = vunpack.c.l.b16 %v979
        %v1012 = vpack.c.b16 %v997, %v996
        %v1013 = vpack.c.b16 %v999, %v998
        %v1014 = vpack.c.b16 %v1001, %v1000
        %v1015 = vpack.c.b16 %v1003, %v1002
        %v1016 = vpack.c.b16 %v1005, %v1004
        %v1017 = vpack.c.b16 %v1007, %v1006
        %v1018 = vpack.c.b16 %v1009, %v1008
        %v1019 = vpack.c.b16 %v1011, %v1010
        %1028 = vmatpush.bf16.msra.mxu0 %v1019
        %1029 = vmatpush.bf16.msra.mxu0 %v1018
        %1030 = vmatpush.bf16.msra.mxu0 %v1017
        %1031 = vmatpush.bf16.msra.mxu0 %v1016
        %1032 = vmatpush.bf16.msra.mxu0 %v1015
        %1033 = vmatpush.bf16.msra.mxu0 %v1014
        %1034 = vmatpush.bf16.msra.mxu0 %v1013
        %1035 = vmatpush.bf16.msra.mxu0 %v1012
        %1036 = vmatmul.bf16.gmra.mxu0 %v948
        %v1037 = vpop.f32.mrf.mxu0
        %v1038 = vadd.f32 0.0, %v1037
        %v1039 = vpop.f32.mrf.mxu0
        %v1040 = vadd.f32 0.0, %v1039
        %1041 = vmatmul.bf16.gmra.mxu0 %v949
        %v1042 = vpop.f32.mrf.mxu0
        %v1043 = vadd.f32 0.0, %v1042
        %v1044 = vpop.f32.mrf.mxu0
        %v1045 = vadd.f32 0.0, %v1044
        %1046 = vmatmul.bf16.gmra.mxu0 %v950
        %v1047 = vpop.f32.mrf.mxu0
        %v1048 = vadd.f32 0.0, %v1047
        %v1049 = vpop.f32.mrf.mxu0
        %v1050 = vadd.f32 0.0, %v1049
        %1051 = vmatmul.bf16.gmra.mxu0 %v951
        %v1052 = vpop.f32.mrf.mxu0
        %v1053 = vadd.f32 0.0, %v1052
        %v1054 = vpop.f32.mrf.mxu0
        %v1055 = vadd.f32 0.0, %v1054
        %1056 = vmatmul.bf16.gmra.mxu0 %v952
        %v1057 = vpop.f32.mrf.mxu0
        %v1058 = vadd.f32 0.0, %v1057
        %v1059 = vpop.f32.mrf.mxu0
        %v1060 = vadd.f32 0.0, %v1059
        %1061 = vmatmul.bf16.gmra.mxu0 %v953
        %v1062 = vpop.f32.mrf.mxu0
        %v1063 = vadd.f32 0.0, %v1062
        %v1064 = vpop.f32.mrf.mxu0
        %v1065 = vadd.f32 0.0, %v1064
        %1066 = vmatmul.bf16.gmra.mxu0 %v954
        %v1067 = vpop.f32.mrf.mxu0
        %v1068 = vadd.f32 0.0, %v1067
        %v1069 = vpop.f32.mrf.mxu0
        %v1070 = vadd.f32 0.0, %v1069
        %1071 = vmatmul.bf16.gmra.mxu0 %v955
        %v1072 = vpop.f32.mrf.mxu0
        %v1073 = vadd.f32 0.0, %v1072
        %v1074 = vpop.f32.mrf.mxu0
        %v1075 = vadd.f32 0.0, %v1074
        %1076 = vmatmul.bf16.gmra.mxu0 %v956
        %v1077 = vpop.f32.mrf.mxu0
        %v1078 = vadd.f32 0.0, %v1077
        %v1079 = vpop.f32.mrf.mxu0
        %v1080 = vadd.f32 0.0, %v1079
        %1081 = vmatmul.bf16.gmra.mxu0 %v957
        %v1082 = vpop.f32.mrf.mxu0
        %v1083 = vadd.f32 0.0, %v1082
        %v1084 = vpop.f32.mrf.mxu0
        %v1085 = vadd.f32 0.0, %v1084
        %1086 = vmatmul.bf16.gmra.mxu0 %v958
        %v1087 = vpop.f32.mrf.mxu0
        %v1088 = vadd.f32 0.0, %v1087
        %v1089 = vpop.f32.mrf.mxu0
        %v1090 = vadd.f32 0.0, %v1089
        %1091 = vmatmul.bf16.gmra.mxu0 %v959
        %v1092 = vpop.f32.mrf.mxu0
        %v1093 = vadd.f32 0.0, %v1092
        %v1094 = vpop.f32.mrf.mxu0
        %v1095 = vadd.f32 0.0, %v1094
        %1096 = vmatmul.bf16.gmra.mxu0 %v960
        %v1097 = vpop.f32.mrf.mxu0
        %v1098 = vadd.f32 0.0, %v1097
        %v1099 = vpop.f32.mrf.mxu0
        %v1100 = vadd.f32 0.0, %v1099
        %1101 = vmatmul.bf16.gmra.mxu0 %v961
        %v1102 = vpop.f32.mrf.mxu0
        %v1103 = vadd.f32 0.0, %v1102
        %v1104 = vpop.f32.mrf.mxu0
        %v1105 = vadd.f32 0.0, %v1104
        %1106 = vmatmul.bf16.gmra.mxu0 %v962
        %v1107 = vpop.f32.mrf.mxu0
        %v1108 = vadd.f32 0.0, %v1107
        %v1109 = vpop.f32.mrf.mxu0
        %v1110 = vadd.f32 0.0, %v1109
        %1111 = vmatmul.bf16.gmra.mxu0 %v963
        %v1112 = vpop.f32.mrf.mxu0
        %v1113 = vadd.f32 0.0, %v1112
        %v1114 = vpop.f32.mrf.mxu0
        %v1115 = vadd.f32 0.0, %v1114
        %1116 = vdwg.mxu0
        %1117 = vst [vmem:[%s310] sm:$0xff] %v1038
        %1118 = vst [vmem:[%s310 + $0x8] sm:$0xff] %v1040
        %1119 = vst [vmem:[%s310 + $0x10] sm:$0xff] %v1043
        %1120 = vst [vmem:[%s310 + $0x18] sm:$0xff] %v1045
        %1121 = vst [vmem:[%s310 + $0x20] sm:$0xff] %v1048
        %1122 = vst [vmem:[%s310 + $0x28] sm:$0xff] %v1050
        %1123 = vst [vmem:[%s310 + $0x30] sm:$0xff] %v1053
        %1124 = vst [vmem:[%s310 + $0x38] sm:$0xff] %v1055
        %1125 = vst [vmem:[%s310 + $0x40] sm:$0xff] %v1058
        %1126 = vst [vmem:[%s310 + $0x48] sm:$0xff] %v1060
        %1127 = vst [vmem:[%s310 + $0x50] sm:$0xff] %v1063
        %1128 = vst [vmem:[%s310 + $0x58] sm:$0xff] %v1065
        %1129 = vst [vmem:[%s310 + $0x60] sm:$0xff] %v1068
        %1130 = vst [vmem:[%s310 + $0x68] sm:$0xff] %v1070
        %1131 = vst [vmem:[%s310 + $0x70] sm:$0xff] %v1073
        %1132 = vst [vmem:[%s310 + $0x78] sm:$0xff] %v1075
        %1133 = vst [vmem:[%s310 + $0x80] sm:$0xff] %v1078
        %1134 = vst [vmem:[%s310 + $0x88] sm:$0xff] %v1080
        %1135 = vst [vmem:[%s310 + $0x90] sm:$0xff] %v1083
        %1136 = vst [vmem:[%s310 + $0x98] sm:$0xff] %v1085
        %1137 = vst [vmem:[%s310 + $0xa0] sm:$0xff] %v1088
        %1138 = vst [vmem:[%s310 + $0xa8] sm:$0xff] %v1090
        %1139 = vst [vmem:[%s310 + $0xb0] sm:$0xff] %v1093
        %1140 = vst [vmem:[%s310 + $0xb8] sm:$0xff] %v1095
        %1141 = vst [vmem:[%s310 + $0xc0] sm:$0xff] %v1098
        %1142 = vst [vmem:[%s310 + $0xc8] sm:$0xff] %v1100
        %1143 = vst [vmem:[%s310 + $0xd0] sm:$0xff] %v1103
        %1144 = vst [vmem:[%s310 + $0xd8] sm:$0xff] %v1105
        %1145 = vst [vmem:[%s310 + $0xe0] sm:$0xff] %v1108
        %1146 = vst [vmem:[%s310 + $0xe8] sm:$0xff] %v1110
        %1147 = vst [vmem:[%s310 + $0xf0] sm:$0xff] %v1113
        %1148 = vst [vmem:[%s310 + $0xf8] sm:$0xff] %v1115
        %s1149 = sand.u32 %s142, 1
        %s1150 = scalar_lea.sflag [#allocation4], %s1149
        %s1151 = sand.u32 %s142, 1
        %s1152 = smul.addr %s1151, 256
        %s1153 = scalar_lea.vmem [#allocation11], %s1152
        // Predicated region
        $region61: #{tpu_custom_call.1} parent=39 // pred_check
          %p1154 = pneg %p152
        $region62: #{tpu_custom_call.1} parent=39 // pred_check_branch
          %1156 = sbr.rel (%p1154) target = $region64
        $region63: #{tpu_custom_call.1} parent=39 // pred_region
          %s1157 = smul.u32 32, %s24
          %1159 = vsyncadd %s1150, 0
          %s1160 = smul.addr %s1157, 8
          %s1161 = scalar_lea.hbm %s5, %s1160
          %s1162 = sshll.u32 %s1153, 4
          %s1163 = int_to_ptr.vmem [resolvable:$true] %s1162
          %s1164 = sshll.u32 %s1161, 4
          %s1165 = int_to_ptr.hbm [resolvable:$true] %s1164
          %1170 = dma.vmem_to_hbm [thread:$0]  %s1163, 4096, %s1165, %s1150, 128, 128, 8
        $region64: #{tpu_custom_call.1} parent=39 // pred_fallthru
          _
      $region40: #{tpu_custom_call.1} parent=5 // pred_fallthru
        _
      %p1171 = scmp.le.s32.totalorder 2, %s19
      // Predicated region
      $region65: #{tpu_custom_call.1} parent=5 // pred_check
        %p1172 = pneg %p1171
      $region66: #{tpu_custom_call.1} parent=5 // pred_check_branch
        %1174 = sbr.rel (%p1172) target = $region68
      $region67: #{tpu_custom_call.1} parent=5 // pred_region
        %s1175 = ssub.s32 %s19, 2
        // Predicated region
        $region69: #{tpu_custom_call.1} parent=67 // pred_check
          %p1176 = pneg %p158
        $region70: #{tpu_custom_call.1} parent=67 // pred_check_branch
          %1178 = sbr.rel (%p1176) target = $region72
        $region71: #{tpu_custom_call.1} parent=67 // pred_region
          %s1179 = sand.u32 %s143, 1
          %s1180 = scalar_lea.sflag [#allocation4], %s1179
          %s1181 = sand.u32 %s143, 1
          %s1182 = smul.addr %s1181, 256
          %s1183 = scalar_lea.vmem [#allocation11], %s1182
          %1185 = dma.done %s1180, 4096
        $region72: #{tpu_custom_call.1} parent=67 // pred_fallthru
          _
      $region68: #{tpu_custom_call.1} parent=5 // pred_fallthru
        _
    $region6: #{tpu_custom_call.1} parent=1 // loop_footer
      %s23 = sadd.s32 1, %s19
    $region7: #{tpu_custom_call.1} parent=1 // loop_footer_branch
      %18 = sbr.rel target = $region3
    $region8: #{tpu_custom_call.1} parent=1 // loop_exit
      _
    %1186 = vsyncpa [#allocation3], 1
    %s1187 = scalar_lea.sflag [#allocation3], 1
    %1188 = vsyncpa %s1187, 1
    %1189 = vsyncpa [#allocation6], 1
    %1190 = vsyncpa [#allocation9], 1
    %1191 = vsyncpa [#allocation4], 1
    %s1192 = scalar_lea.sflag [#allocation4], 1
    %1193 = vsyncpa %s1192, 1

</llo_original>
